<compile_context>
chip_gen: v7x
topology: tpu7x:2x2x1
jax: 0.10.0
libtpu: 0.0.40
codegen_flags: <defaults>
</compile_context>

<pallas_src>
import functools

import jax
import jax.numpy as jnp
from jax.experimental import pallas as pl
from jax.experimental.pallas import tpu as pltpu

_LANE = 128
_MAX_TILE_F = 512  # lanes per feature tile; sized to double-buffer on v7x (64 MiB VMEM)


def _batchnorm1d_kernel(x_ref, gamma_ref, beta_ref, mm_ref, mv_ref,
                        y_ref, new_mm_ref, new_mv_ref,
                        *, eps, momentum):
    x = x_ref[...].astype(jnp.float32)          # (N, TF)
    gamma = gamma_ref[...].astype(jnp.float32)  # (1, TF)
    beta = beta_ref[...].astype(jnp.float32)    # (1, TF)
    mm = mm_ref[...].astype(jnp.float32)        # (1, TF)
    mv = mv_ref[...].astype(jnp.float32)        # (1, TF)

    n = x.shape[0]
    mu = jnp.mean(x, axis=0, keepdims=True)                       # (1, TF)
    centered = x - mu
    # One cross-sublane reduction, reused for biased + unbiased variance.
    sq_sum = jnp.sum(centered * centered, axis=0, keepdims=True)  # (1, TF)
    var_b = sq_sum * (1.0 / n)
    var_u = sq_sum * (1.0 / (n - 1))

    inv_std = jax.lax.rsqrt(var_b + eps)
    # Fold affine: y = gamma*(x-mu)*inv_std + beta == x*scale + shift
    scale = gamma * inv_std
    shift = beta - mu * scale
    y = x * scale + shift

    y_ref[...] = y.astype(y_ref.dtype)
    new_mm_ref[...] = ((1.0 - momentum) * mm + momentum * mu).astype(new_mm_ref.dtype)
    new_mv_ref[...] = ((1.0 - momentum) * mv + momentum * var_u).astype(new_mv_ref.dtype)


def batchnorm1d(x, gamma, beta, moving_mean, moving_var, eps=1e-5, momentum=0.1):
    """x: (N, F); gamma/beta/moving_mean/moving_var: (1, F). Returns (y, new_mm, new_mv)."""
    N, F = x.shape
    if N < 2:
        raise ValueError("batchnorm1d training path requires N >= 2 (unbiased variance).")

    # Pad the feature axis up to a lane multiple so stores are lane-dense, then
    # pick the largest 128-multiple tile <= _MAX_TILE_F that divides the padded F.
    f_pad = pl.cdiv(F, _LANE) * _LANE
    tile_f = min(_MAX_TILE_F, f_pad)
    while f_pad % tile_f != 0:
        tile_f -= _LANE
    n_tiles = f_pad // tile_f

    if f_pad != F:
        pad = f_pad - F
        x_p = jnp.pad(x, ((0, 0), (0, pad)))
        gamma_p = jnp.pad(gamma, ((0, 0), (0, pad)), constant_values=1.0)
        beta_p = jnp.pad(beta, ((0, 0), (0, pad)))
        mm_p = jnp.pad(moving_mean, ((0, 0), (0, pad)))
        mv_p = jnp.pad(moving_var, ((0, 0), (0, pad)), constant_values=1.0)
    else:
        x_p, gamma_p, beta_p, mm_p, mv_p = x, gamma, beta, moving_mean, moving_var

    stat_dtype = moving_mean.dtype

    kernel = functools.partial(_batchnorm1d_kernel, eps=eps, momentum=momentum)

    x_spec = pl.BlockSpec((N, tile_f), lambda j: (0, j))
    p_spec = pl.BlockSpec((1, tile_f), lambda j: (0, j))

    out_shapes = (
        jax.ShapeDtypeStruct((N, f_pad), x.dtype),
        jax.ShapeDtypeStruct((1, f_pad), stat_dtype),
        jax.ShapeDtypeStruct((1, f_pad), stat_dtype),
    )

    # VMEM budget: double-buffered x tile in + y tile out + small param tiles.
    x_tile_bytes = N * tile_f * jnp.dtype(x.dtype).itemsize
    y_tile_bytes = N * tile_f * jnp.dtype(x.dtype).itemsize
    param_bytes = 8 * tile_f * 4 * 2  # 4 in + 3 out (1, TF) tiles, double-buffered, f32 upper bound
    vmem_limit = 2 * (x_tile_bytes + y_tile_bytes) + param_bytes + (2 << 20)
    vmem_limit = max(vmem_limit, 16 << 20)
    vmem_limit = min(vmem_limit, 100 << 20)

    y_p, new_mm_p, new_mv_p = pl.pallas_call(
        kernel,
        out_shape=out_shapes,
        grid_spec=pltpu.PrefetchScalarGridSpec(
            num_scalar_prefetch=0,
            grid=(n_tiles,),
            in_specs=[x_spec, p_spec, p_spec, p_spec, p_spec],
            out_specs=[x_spec, p_spec, p_spec],
        ),
        compiler_params=pltpu.CompilerParams(
            dimension_semantics=("parallel",),
            vmem_limit_bytes=int(vmem_limit),
        ),
    )(x_p, gamma_p, beta_p, mm_p, mv_p)

    if f_pad != F:
        return y_p[:, :F], new_mm_p[:, :F], new_mv_p[:, :F]
    return y_p, new_mm_p, new_mv_p


if __name__ == "__main__":
    key = jax.random.PRNGKey(0)
    N, F = 8, 32  # batch=8, num_features=32 (padded to 128 lanes inside the wrapper)

    x = jax.random.normal(key, (N, F), dtype=jnp.float32)

    # Parameter init matching the module's __init__ shapes (1, F).
    gamma = jnp.ones((1, F), dtype=jnp.float32)
    beta = jnp.zeros((1, F), dtype=jnp.float32)
    moving_mean = jnp.zeros((1, F), dtype=jnp.float32)
    moving_var = jnp.ones((1, F), dtype=jnp.float32)

    y, new_mm, new_mv = batchnorm1d(x, gamma, beta, moving_mean, moving_var)
    jax.block_until_ready((y, new_mm, new_mv))

    # Plain-JAX reference (same math as the PyTorch training branch).
    mu = jnp.mean(x, axis=0, keepdims=True)
    var_b = jnp.mean((x - mu) ** 2, axis=0, keepdims=True)
    var_u = jnp.sum((x - mu) ** 2, axis=0, keepdims=True) / (N - 1)
    y_ref = gamma * (x - mu) / jnp.sqrt(var_b + 1e-5) + beta
    mm_ref = 0.9 * moving_mean + 0.1 * mu
    mv_ref = 0.9 * moving_var + 0.1 * var_u

    assert jnp.allclose(y, y_ref, atol=1e-5, rtol=1e-5)
    assert jnp.allclose(new_mm, mm_ref, atol=1e-6, rtol=1e-6)
    assert jnp.allclose(new_mv, mv_ref, atol=1e-6, rtol=1e-6)

    print("KERNEL_OK")
</pallas_src>

<mosaic_0001>
module attributes {stable_mosaic.version = 11 : i64} {
  func.func @_batchnorm1d_kernel(%arg0: i32, %arg1: memref<8x128xf32, #tpu.memory_space<vmem>>, %arg2: memref<1x128xf32, #tpu.memory_space<vmem>>, %arg3: memref<1x128xf32, #tpu.memory_space<vmem>>, %arg4: memref<1x128xf32, #tpu.memory_space<vmem>>, %arg5: memref<1x128xf32, #tpu.memory_space<vmem>>, %arg6: memref<8x128xf32, #tpu.memory_space<vmem>>, %arg7: memref<1x128xf32, #tpu.memory_space<vmem>>, %arg8: memref<1x128xf32, #tpu.memory_space<vmem>>) attributes {dimension_semantics = [#tpu.dimension_semantics<parallel>], iteration_bounds = array<i64: 1>, scalar_prefetch = 0 : i64, scratch_operands = 0 : i64, tpu.core_type = #tpu.core_type<tc>, window_params = [{transform_indices = @transform_0, window_bounds = array<i64: 8, 128>}, {transform_indices = @transform_1, window_bounds = array<i64: 1, 128>}, {transform_indices = @transform_2, window_bounds = array<i64: 1, 128>}, {transform_indices = @transform_3, window_bounds = array<i64: 1, 128>}, {transform_indices = @transform_4, window_bounds = array<i64: 1, 128>}, {transform_indices = @transform_5, window_bounds = array<i64: 8, 128>}, {transform_indices = @transform_6, window_bounds = array<i64: 1, 128>}, {transform_indices = @transform_7, window_bounds = array<i64: 1, 128>}]} {
    %c0 = arith.constant 0 : index
    %c0_0 = arith.constant 0 : index
    %0 = vector.load %arg1[%c0, %c0_0] : memref<8x128xf32, #tpu.memory_space<vmem>>, vector<8x128xf32>
    %c0_1 = arith.constant 0 : index
    %c0_2 = arith.constant 0 : index
    %1 = vector.load %arg2[%c0_1, %c0_2] : memref<1x128xf32, #tpu.memory_space<vmem>>, vector<1x128xf32>
    %c0_3 = arith.constant 0 : index
    %c0_4 = arith.constant 0 : index
    %2 = vector.load %arg3[%c0_3, %c0_4] : memref<1x128xf32, #tpu.memory_space<vmem>>, vector<1x128xf32>
    %c0_5 = arith.constant 0 : index
    %c0_6 = arith.constant 0 : index
    %3 = vector.load %arg4[%c0_5, %c0_6] : memref<1x128xf32, #tpu.memory_space<vmem>>, vector<1x128xf32>
    %c0_7 = arith.constant 0 : index
    %c0_8 = arith.constant 0 : index
    %4 = vector.load %arg5[%c0_7, %c0_8] : memref<1x128xf32, #tpu.memory_space<vmem>>, vector<1x128xf32>
    %cst = arith.constant dense<0.000000e+00> : vector<128xf32>
    %5 = vector.multi_reduction <add>, %0, %cst [0] : vector<8x128xf32> to vector<128xf32>
    %6 = vector.shape_cast %5 : vector<128xf32> to vector<1x128xf32>
    %cst_9 = arith.constant 8.000000e+00 : f32
    %7 = vector.broadcast %cst_9 : f32 to vector<1x128xf32>
    %8 = arith.divf %6, %7 : vector<1x128xf32>
    %9 = vector.broadcast %8 : vector<1x128xf32> to vector<8x128xf32>
    %10 = arith.subf %0, %9 : vector<8x128xf32>
    %11 = arith.mulf %10, %10 : vector<8x128xf32>
    %cst_10 = arith.constant dense<0.000000e+00> : vector<128xf32>
    %12 = vector.multi_reduction <add>, %11, %cst_10 [0] : vector<8x128xf32> to vector<128xf32>
    %13 = vector.shape_cast %12 : vector<128xf32> to vector<1x128xf32>
    %cst_11 = arith.constant 1.250000e-01 : f32
    %14 = vector.broadcast %cst_11 : f32 to vector<1x128xf32>
    %15 = arith.mulf %13, %14 : vector<1x128xf32>
    %cst_12 = arith.constant 0.142857149 : f32
    %16 = vector.broadcast %cst_12 : f32 to vector<1x128xf32>
    %17 = arith.mulf %13, %16 : vector<1x128xf32>
    %cst_13 = arith.constant 9.99999974E-6 : f32
    %18 = vector.broadcast %cst_13 : f32 to vector<1x128xf32>
    %19 = arith.addf %15, %18 : vector<1x128xf32>
    %20 = math.rsqrt %19 : vector<1x128xf32>
    %21 = arith.mulf %1, %20 : vector<1x128xf32>
    %22 = arith.mulf %8, %21 : vector<1x128xf32>
    %23 = arith.subf %2, %22 : vector<1x128xf32>
    %24 = vector.broadcast %21 : vector<1x128xf32> to vector<8x128xf32>
    %25 = arith.mulf %0, %24 : vector<8x128xf32>
    %26 = vector.broadcast %23 : vector<1x128xf32> to vector<8x128xf32>
    %27 = arith.addf %25, %26 : vector<8x128xf32>
    %c0_14 = arith.constant 0 : index
    %c0_15 = arith.constant 0 : index
    %28 = vector.load %arg6[%c0_14, %c0_15] : memref<8x128xf32, #tpu.memory_space<vmem>>, vector<8x128xf32>
    tpu.vector_store %arg6[%c0_14, %c0_15], %27 {strides = array<i32>} : memref<8x128xf32, #tpu.memory_space<vmem>>, vector<8x128xf32>,
    %cst_16 = arith.constant 0.899999976 : f32
    %29 = vector.broadcast %cst_16 : f32 to vector<1x128xf32>
    %30 = arith.mulf %29, %3 : vector<1x128xf32>
    %cst_17 = arith.constant 1.000000e-01 : f32
    %31 = vector.broadcast %cst_17 : f32 to vector<1x128xf32>
    %32 = arith.mulf %31, %8 : vector<1x128xf32>
    %33 = arith.addf %30, %32 : vector<1x128xf32>
    %c0_18 = arith.constant 0 : index
    %c0_19 = arith.constant 0 : index
    %34 = vector.load %arg7[%c0_18, %c0_19] : memref<1x128xf32, #tpu.memory_space<vmem>>, vector<1x128xf32>
    tpu.vector_store %arg7[%c0_18, %c0_19], %33 {strides = array<i32>} : memref<1x128xf32, #tpu.memory_space<vmem>>, vector<1x128xf32>,
    %cst_20 = arith.constant 0.899999976 : f32
    %35 = vector.broadcast %cst_20 : f32 to vector<1x128xf32>
    %36 = arith.mulf %35, %4 : vector<1x128xf32>
    %cst_21 = arith.constant 1.000000e-01 : f32
    %37 = vector.broadcast %cst_21 : f32 to vector<1x128xf32>
    %38 = arith.mulf %37, %17 : vector<1x128xf32>
    %39 = arith.addf %36, %38 : vector<1x128xf32>
    %c0_22 = arith.constant 0 : index
    %c0_23 = arith.constant 0 : index
    %40 = vector.load %arg8[%c0_22, %c0_23] : memref<1x128xf32, #tpu.memory_space<vmem>>, vector<1x128xf32>
    tpu.vector_store %arg8[%c0_22, %c0_23], %39 {strides = array<i32>} : memref<1x128xf32, #tpu.memory_space<vmem>>, vector<1x128xf32>,
    return
  }
  func.func @transform_0(%arg0: i32) -> (i32, i32) {
    %c0_i32 = arith.constant 0 : i32
    %c0_i32_0 = arith.constant 0 : i32
    return %c0_i32, %arg0 : i32, i32
  }
  func.func @transform_1(%arg0: i32) -> (i32, i32) {
    %c0_i32 = arith.constant 0 : i32
    %c0_i32_0 = arith.constant 0 : i32
    return %c0_i32, %arg0 : i32, i32
  }
  func.func @transform_2(%arg0: i32) -> (i32, i32) {
    %c0_i32 = arith.constant 0 : i32
    %c0_i32_0 = arith.constant 0 : i32
    return %c0_i32, %arg0 : i32, i32
  }
  func.func @transform_3(%arg0: i32) -> (i32, i32) {
    %c0_i32 = arith.constant 0 : i32
    %c0_i32_0 = arith.constant 0 : i32
    return %c0_i32, %arg0 : i32, i32
  }
  func.func @transform_4(%arg0: i32) -> (i32, i32) {
    %c0_i32 = arith.constant 0 : i32
    %c0_i32_0 = arith.constant 0 : i32
    return %c0_i32, %arg0 : i32, i32
  }
  func.func @transform_5(%arg0: i32) -> (i32, i32) {
    %c0_i32 = arith.constant 0 : i32
    %c0_i32_0 = arith.constant 0 : i32
    return %c0_i32, %arg0 : i32, i32
  }
  func.func @transform_6(%arg0: i32) -> (i32, i32) {
    %c0_i32 = arith.constant 0 : i32
    %c0_i32_0 = arith.constant 0 : i32
    return %c0_i32, %arg0 : i32, i32
  }
  func.func @transform_7(%arg0: i32) -> (i32, i32) {
    %c0_i32 = arith.constant 0 : i32
    %c0_i32_0 = arith.constant 0 : i32
    return %c0_i32, %arg0 : i32, i32
  }
}

</mosaic_0001>

<llo_original>
// kernel: tpu_custom_call.1
$region0: #{tpu_custom_call.1}
  #allocation0 [shape = 'u32[]', space=smem, size = 0x4, offset = 0x4, fixed_abs, tag = 'smem constant byte address 0x4 - core index']
  #allocation1 [shape = 'u32[144,128]{1,0:T(1,128)}', space=vmem, size = 0x12000, scoped, tag = 'internal scratch']
  %s0 = inlined_call_operand.hbm [shape: f32[8,128], index: 0, kind: input, shape index: {}]
  %s1 = inlined_call_operand.vmem [shape: f32[1,128], index: 1, kind: input, shape index: {}]
  %s2 = inlined_call_operand.vmem [shape: f32[1,128], index: 2, kind: input, shape index: {}]
  %s3 = inlined_call_operand.vmem [shape: f32[1,128], index: 3, kind: input, shape index: {}]
  %s4 = inlined_call_operand.vmem [shape: f32[1,128], index: 4, kind: input, shape index: {}]
  %s5 = inlined_call_operand.hbm [shape: f32[8,128], index: 5, kind: output, shape index: {0}]
  %s6 = inlined_call_operand.hbm [shape: f32[1,128], index: 6, kind: output, shape index: {1}]
  %s7 = inlined_call_operand.hbm [shape: f32[1,128], index: 7, kind: output, shape index: {2}]
  %8 = xla_tuple %s5, %s6, %s7
  %s9 = sld [smem:[#allocation0]]
  $region50: #{tpu_custom_call.1} parent=0
    _
  %s11 = ssub.s32 1, %s9
  %s12 = scalar_select 0, %s11, %s9
  $region1: #{tpu_custom_call.1} parent=0
    #allocation2 [shape = 'u8[4096]{0}', space=vmem, size = 0x1000, scoped, tag = 'input window, operand 0, single buffered']
    #allocation3 [shape = 's32[1]{0}', space=sflag, size = 0x4, scoped, tag = 'scoped memory for tpu_custom_call.1']
    #allocation4 [shape = 's32[1]{0}', space=sflag, size = 0x4, scoped, tag = 'scoped memory for tpu_custom_call.1']
    #allocation5 [shape = 'u8[4096]{0}', space=vmem, size = 0x1000, scoped, tag = 'output window, operand 0, single buffered']
    #allocation6 [shape = 'u8[512]{0}', space=vmem, size = 0x400, scoped, tag = 'output window, operand 1, single buffered']
    #allocation7 [shape = 's32[1]{0}', space=sflag, size = 0x4, scoped, tag = 'scoped memory for tpu_custom_call.1']
    #allocation8 [shape = 'u8[512]{0}', space=vmem, size = 0x400, scoped, tag = 'output window, operand 2, single buffered']
    %13 = vsyncpa [#allocation3], 0
    %14 = vsyncpa [#allocation4], 0
    %15 = vsyncpa [#allocation7], 0
    // Predicated region
    $region2: #{tpu_custom_call.1} parent=1 // pred_check
      _
    $region3: #{tpu_custom_call.1} parent=1 // pred_check_branch
      %17 = sbr.rel (0) target = $region5
    $region4: #{tpu_custom_call.1} parent=1 // pred_region
      %s19 = ssub.s32 128, 128
      %20 = vsyncadd [#allocation3], %s19
      %s22 = sshll.u32 [#allocation2], 4
      %s23 = int_to_ptr.vmem [resolvable:$true] %s22
      %25 = dma.hbm_to_vmem [thread:$0]  %s0, 128, %s23, [#allocation3]
    $region5: #{tpu_custom_call.1} parent=1 // pred_fallthru
      _
    // Predicated region
    $region6: #{tpu_custom_call.1} parent=1 // pred_check
      _
    $region7: #{tpu_custom_call.1} parent=1 // pred_check_branch
      %27 = sbr.rel (0) target = $region9
    $region8: #{tpu_custom_call.1} parent=1 // pred_region
      _
    $region9: #{tpu_custom_call.1} parent=1 // pred_fallthru
      _
    // Predicated region
    $region10: #{tpu_custom_call.1} parent=1 // pred_check
      _
    $region11: #{tpu_custom_call.1} parent=1 // pred_check_branch
      %29 = sbr.rel (0) target = $region13
    $region12: #{tpu_custom_call.1} parent=1 // pred_region
      _
    $region13: #{tpu_custom_call.1} parent=1 // pred_fallthru
      _
    // Predicated region
    $region14: #{tpu_custom_call.1} parent=1 // pred_check
      _
    $region15: #{tpu_custom_call.1} parent=1 // pred_check_branch
      %31 = sbr.rel (0) target = $region17
    $region16: #{tpu_custom_call.1} parent=1 // pred_region
      _
    $region17: #{tpu_custom_call.1} parent=1 // pred_fallthru
      _
    // Predicated region
    $region18: #{tpu_custom_call.1} parent=1 // pred_check
      _
    $region19: #{tpu_custom_call.1} parent=1 // pred_check_branch
      %33 = sbr.rel (0) target = $region21
    $region20: #{tpu_custom_call.1} parent=1 // pred_region
      _
    $region21: #{tpu_custom_call.1} parent=1 // pred_fallthru
      _
    // Predicated region
    $region22: #{tpu_custom_call.1} parent=1 // pred_check
      _
    $region23: #{tpu_custom_call.1} parent=1 // pred_check_branch
      %35 = sbr.rel (0) target = $region25
    $region24: #{tpu_custom_call.1} parent=1 // pred_region
      %36 = dma.done [#allocation3], 128
    $region25: #{tpu_custom_call.1} parent=1 // pred_fallthru
      _
    %v37 = vld [vmem:[#allocation2] sm:$0xff]
    %v38 = vld [vmem:[%s1] sm:$0x1]
    %v39 = vld [vmem:[%s2] sm:$0x1]
    %v40 = vld [vmem:[%s3] sm:$0x1]
    %v41 = vld [vmem:[%s4] sm:$0x1]
    %v42 = vrot.slane %v37, 4
    %v43 = vadd.f32 %v37, %v42
    %v44 = vrot.slane %v43, 2
    %v45 = vadd.f32 %v43, %v44
    %v46 = vrot.slane %v45, 1
    %v47 = vadd.f32 %v45, %v46
    %v48 = vrcp.pop 8.0
    %v49 = vmul.f32 %v47, %v48
    %v50 = vsub.f32 %v37, %v49
    %v51 = vmul.f32 %v50, %v50
    %v52 = vrot.slane %v51, 4
    %v53 = vadd.f32 %v51, %v52
    %v54 = vrot.slane %v53, 2
    %v55 = vadd.f32 %v53, %v54
    %v56 = vrot.slane %v55, 1
    %v57 = vadd.f32 %v55, %v56
    %v58 = vmul.f32 %v57, 0.125
    %v59 = vmul.f32 %v57, 0.14285715
    %v60 = vadd.f32 %v58, 1e-05
    %v61 = vrsqrt.pop %v60
    %v62 = vmul.f32 %v38, %v61
    %v63 = vmul.f32 %v49, %v62
    %v64 = vsub.f32 %v39, %v63
    %v66 = vlaneseq
    %v67 = vshrl.u32 %v66, 7
    %v68 = vsub.s32 0, %v67
    %v69 = vrot.slane %v62, %v68
    %v71 = vmul.f32 %v37, %v69
    %v73 = vlaneseq
    %v74 = vshrl.u32 %v73, 7
    %v75 = vsub.s32 0, %v74
    %v76 = vrot.slane %v64, %v75
    %v78 = vadd.f32 %v71, %v76
    %79 = vst [vmem:[#allocation5] sm:$0xff] %v78
    %v80 = vmul.f32 %v40, 0.9
    %v81 = vmul.f32 %v49, 0.1
    %v82 = vadd.f32 %v80, %v81
    %83 = vst [vmem:[#allocation6] sm:$0x1] %v82
    %v84 = vmul.f32 %v41, 0.9
    %v85 = vmul.f32 %v59, 0.1
    %v86 = vadd.f32 %v84, %v85
    %87 = vst [vmem:[#allocation8] sm:$0x1] %v86
    // Predicated region
    $region26: #{tpu_custom_call.1} parent=1 // pred_check
      _
    $region27: #{tpu_custom_call.1} parent=1 // pred_check_branch
      %89 = sbr.rel (0) target = $region29
    $region28: #{tpu_custom_call.1} parent=1 // pred_region
      %s91 = ssub.s32 128, 128
      %92 = vsyncadd [#allocation4], %s91
      %s94 = sshll.u32 [#allocation5], 4
      %s95 = int_to_ptr.vmem [resolvable:$true] %s94
      %97 = dma.vmem_to_hbm [thread:$0]  %s95, 128, %s5, [#allocation4]
    $region29: #{tpu_custom_call.1} parent=1 // pred_fallthru
      _
    // Predicated region
    $region30: #{tpu_custom_call.1} parent=1 // pred_check
      _
    $region31: #{tpu_custom_call.1} parent=1 // pred_check_branch
      %99 = sbr.rel (0) target = $region33
    $region32: #{tpu_custom_call.1} parent=1 // pred_region
      %s101 = ssub.s32 16, 16
      %102 = vsyncadd [#allocation7], %s101
      %s104 = sshll.u32 [#allocation6], 4
      %s105 = int_to_ptr.vmem [resolvable:$true] %s104
      %107 = dma.vmem_to_hbm [thread:$0]  %s105, 16, %s6, [#allocation7]
    $region33: #{tpu_custom_call.1} parent=1 // pred_fallthru
      _
    // Predicated region
    $region34: #{tpu_custom_call.1} parent=1 // pred_check
      _
    $region35: #{tpu_custom_call.1} parent=1 // pred_check_branch
      %109 = sbr.rel (0) target = $region37
    $region36: #{tpu_custom_call.1} parent=1 // pred_region
      %s111 = ssub.s32 16, 16
      %112 = vsyncadd [#allocation7], %s111
      %s114 = sshll.u32 [#allocation8], 4
      %s115 = int_to_ptr.vmem [resolvable:$true] %s114
      %117 = dma.vmem_to_hbm [thread:$0]  %s115, 16, %s7, [#allocation7]
    $region37: #{tpu_custom_call.1} parent=1 // pred_fallthru
      _
    // Predicated region
    $region38: #{tpu_custom_call.1} parent=1 // pred_check
      _
    $region39: #{tpu_custom_call.1} parent=1 // pred_check_branch
      %119 = sbr.rel (0) target = $region41
    $region40: #{tpu_custom_call.1} parent=1 // pred_region
      %120 = dma.done [#allocation4], 128
    $region41: #{tpu_custom_call.1} parent=1 // pred_fallthru
      _
    // Predicated region
    $region42: #{tpu_custom_call.1} parent=1 // pred_check
      _
    $region43: #{tpu_custom_call.1} parent=1 // pred_check_branch
      %122 = sbr.rel (0) target = $region45
    $region44: #{tpu_custom_call.1} parent=1 // pred_region
      %123 = dma.done [#allocation7], 16
    $region45: #{tpu_custom_call.1} parent=1 // pred_fallthru
      _
    // Predicated region
    $region46: #{tpu_custom_call.1} parent=1 // pred_check
      _
    $region47: #{tpu_custom_call.1} parent=1 // pred_check_branch
      %125 = sbr.rel (0) target = $region49
    $region48: #{tpu_custom_call.1} parent=1 // pred_region
      %126 = dma.done [#allocation7], 16
    $region49: #{tpu_custom_call.1} parent=1 // pred_fallthru
      _
    %127 = vsyncpa [#allocation3], 1
    %128 = vsyncpa [#allocation4], 1
    %129 = vsyncpa [#allocation7], 1

</llo_original>
